<compile_context>
chip_gen: v7x
topology: tpu7x:2x2x1
jax: 0.10.0
libtpu: 0.0.40
codegen_flags: <defaults>
</compile_context>

<pallas_src>
import jax
import jax.numpy as jnp
from jax.experimental import pallas as pl
from jax.experimental.pallas import tpu as pltpu

LANE = 128


def _round_up(x, m):
    return ((x + m - 1) // m) * m


def critic_kernel(obs_ref, w1_ref, b1_ref, w2_ref, b2_ref, w3_ref, b3_ref, out_ref):
    # In-kernel bf16 cast of obs (wrapper keeps obs f32 -> 4 B/elem HBM read).
    x = obs_ref[...].astype(jnp.bfloat16)                          # (tb, obs_dim)

    # Hidden layer 1: bf16 MXU matmul, f32 accumulate; bias + tanh in f32.
    h = jnp.dot(x, w1_ref[...], preferred_element_type=jnp.float32)
    h = jnp.tanh(h + b1_ref[...])

    # Hidden layer 2.
    h = jnp.dot(h.astype(jnp.bfloat16), w2_ref[...],
                preferred_element_type=jnp.float32)
    h = jnp.tanh(h + b2_ref[...])

    # Output layer (Identity activation): contract w3 (1, H2) with h (tb, H2)
    # over their last dims -> lane-dense (1, tb) row (unmasked stores, wide
    # output DMA), instead of a (tb, 1) column.
    v = jax.lax.dot_general(
        w3_ref[...], h.astype(jnp.bfloat16),
        dimension_numbers=(((1,), (1,)), ((), ())),
        preferred_element_type=jnp.float32)                         # (1, tb)
    out_ref[...] = (v + b3_ref[...]).astype(out_ref.dtype)


def prepare_params(params):
    """One-time prep (call OUTSIDE the hot path): pad hidden dims to multiples
    of 128 and pre-cast matmul weights to bf16.  Zero padding is numerically
    exact: padded hidden units get pre-activation 0 -> tanh(0)=0 and multiply
    zero rows / zero w3 entries downstream."""
    w1, b1, w2, b2, w3, b3 = params
    obs_dim, h1 = w1.shape
    h2 = w2.shape[1]
    h1p, h2p = _round_up(h1, LANE), _round_up(h2, LANE)

    w1p = jnp.zeros((obs_dim, h1p), jnp.float32).at[:, :h1].set(w1)
    b1p = jnp.zeros((1, h1p), jnp.float32).at[:, :h1].set(b1)
    w2p = jnp.zeros((h1p, h2p), jnp.float32).at[:h1, :h2].set(w2)
    b2p = jnp.zeros((1, h2p), jnp.float32).at[:, :h2].set(b2)
    w3p = jnp.zeros((1, h2p), jnp.float32).at[:, :h2].set(w3)

    return (w1p.astype(jnp.bfloat16), b1p,
            w2p.astype(jnp.bfloat16), b2p,
            w3p.astype(jnp.bfloat16), b3)


def mlp_critic_forward(obs, kernel_params, *, batch_tile=512):
    """obs: (B, obs_dim) float32 -> (B,) float32 value estimates."""
    w1, b1, w2, b2, w3, b3 = kernel_params
    B, obs_dim = obs.shape
    h1p, h2p = w1.shape[1], w2.shape[1]

    # Batch tile: multiple of 128 (lane-dense output rows).  Cap near
    # ceil(B/2) so a medium batch still yields >= 2 grid tiles for the two
    # v7x TensorCores (no effect on v5e/v6e's single TC).
    tb = min(batch_tile, max(LANE, _round_up(pl.cdiv(B, 2), LANE)))
    n_tiles = pl.cdiv(B, tb)
    b_pad = n_tiles * tb
    if b_pad != B:
        obs = jnp.pad(obs, ((0, b_pad - B), (0, 0)))

    cost = pl.CostEstimate(
        flops=2 * b_pad * (obs_dim * h1p + h1p * h2p + h2p),
        transcendentals=b_pad * (h1p + h2p),
        bytes_accessed=(b_pad * obs_dim * 4                         # obs (f32)
                        + (obs_dim * h1p + h1p * h2p + h2p) * 2     # bf16 weights
                        + (h1p + h2p + 1) * 4                       # f32 biases
                        + b_pad * 4),                               # output
    )

    out = pl.pallas_call(
        critic_kernel,
        out_shape=jax.ShapeDtypeStruct((n_tiles, tb), jnp.float32),
        grid=(n_tiles,),
        in_specs=[
            pl.BlockSpec((tb, obs_dim), lambda i: (i, 0)),    # obs: streamed f32
            pl.BlockSpec((obs_dim, h1p), lambda i: (0, 0)),   # W1 (bf16, VMEM-resident)
            pl.BlockSpec((1, h1p), lambda i: (0, 0)),         # b1 (f32)
            pl.BlockSpec((h1p, h2p), lambda i: (0, 0)),       # W2 (bf16)
            pl.BlockSpec((1, h2p), lambda i: (0, 0)),         # b2 (f32)
            pl.BlockSpec((1, h2p), lambda i: (0, 0)),         # W3 (bf16, PyTorch layout)
            pl.BlockSpec((1, 1), lambda i: (0, 0)),           # b3 (f32)
        ],
        out_specs=pl.BlockSpec((1, tb), lambda i: (i, 0)),    # lane-dense rows
        compiler_params=pltpu.CompilerParams(
            dimension_semantics=("parallel",),                # v7x megacore sharding
            vmem_limit_bytes=32 * 1024 * 1024,                # > v5e 16 MiB default, safe on v7x
        ),
        cost_estimate=cost,
    )(obs, w1, b1, w2, b2, w3, b3)

    return out.reshape(-1)[:B]


def init_params(key, obs_dim, hidden_sizes):
    """Deterministic init.  W1/W2 stored as (in, out); biases as (1, out);
    final-layer weight in PyTorch layout (1, hidden_sizes[-1]), bias (1, 1)."""
    sizes = [obs_dim] + list(hidden_sizes) + [1]
    params = []
    n_layers = len(sizes) - 1
    for j in range(n_layers):
        key, wk, bk = jax.random.split(key, 3)
        bound = 1.0 / jnp.sqrt(sizes[j])
        if j < n_layers - 1:
            w = jax.random.uniform(
                wk, (sizes[j], sizes[j + 1]), jnp.float32, -bound, bound)
        else:
            w = jax.random.uniform(
                wk, (sizes[j + 1], sizes[j]), jnp.float32, -bound, bound)
        b = jax.random.uniform(
            bk, (1, sizes[j + 1]), jnp.float32, -bound, bound)
        params += [w, b]
    return tuple(params)


def mlp_critic_ref(obs, params):
    """Pure-JAX f32 reference of the same forward pass (unpadded params)."""
    w1, b1, w2, b2, w3, b3 = params
    h = jnp.tanh(obs @ w1 + b1)
    h = jnp.tanh(h @ w2 + b2)
    v = jnp.sum(h * w3, axis=-1, keepdims=True) + b3
    return jnp.squeeze(v, axis=-1)


if __name__ == "__main__":
    key = jax.random.PRNGKey(0)

    B, obs_dim = 8, 16
    hidden_sizes = (32, 32)

    key, pkey, okey = jax.random.split(key, 3)
    params = init_params(pkey, obs_dim, hidden_sizes)
    kernel_params = prepare_params(params)   # pad + bf16 cast ONCE, outside hot path
    obs = jax.random.normal(okey, (B, obs_dim), dtype=jnp.float32)

    out = mlp_critic_forward(obs, kernel_params)
    out = jax.block_until_ready(out)

    ref = mlp_critic_ref(obs, params)
    assert out.shape == (B,), out.shape
    # bf16 MXU operands (f32 accumulate) -> loosened tolerance vs f32 ref.
    assert jnp.allclose(out, ref, atol=2e-2, rtol=2e-2), (out, ref)

    print("KERNEL_OK")
</pallas_src>

<mosaic_0001>
module attributes {stable_mosaic.version = 11 : i64} {
  func.func @critic_kernel(%arg0: i32, %arg1: memref<128x16xf32, #tpu.memory_space<vmem>>, %arg2: memref<16x128xbf16, #tpu.memory_space<vmem>>, %arg3: memref<1x128xf32, #tpu.memory_space<vmem>>, %arg4: memref<128x128xbf16, #tpu.memory_space<vmem>>, %arg5: memref<1x128xf32, #tpu.memory_space<vmem>>, %arg6: memref<1x128xbf16, #tpu.memory_space<vmem>>, %arg7: memref<1x1xf32, #tpu.memory_space<vmem>>, %arg8: memref<1x128xf32, #tpu.memory_space<vmem>>) attributes {dimension_semantics = [#tpu.dimension_semantics<parallel>], iteration_bounds = array<i64: 1>, scalar_prefetch = 0 : i64, scratch_operands = 0 : i64, tpu.core_type = #tpu.core_type<tc>, window_params = [{transform_indices = @transform_0, window_bounds = array<i64: 128, 16>}, {pipeline_mode = #tpu.pipeline_mode<synchronous>, transform_indices = @transform_1, window_bounds = array<i64: 16, 128>}, {pipeline_mode = #tpu.pipeline_mode<synchronous>, transform_indices = @transform_2, window_bounds = array<i64: 1, 128>}, {pipeline_mode = #tpu.pipeline_mode<synchronous>, transform_indices = @transform_3, window_bounds = array<i64: 128, 128>}, {pipeline_mode = #tpu.pipeline_mode<synchronous>, transform_indices = @transform_4, window_bounds = array<i64: 1, 128>}, {pipeline_mode = #tpu.pipeline_mode<synchronous>, transform_indices = @transform_5, window_bounds = array<i64: 1, 128>}, {pipeline_mode = #tpu.pipeline_mode<synchronous>, transform_indices = @transform_6, window_bounds = array<i64: 1, 1>}, {transform_indices = @transform_7, window_bounds = array<i64: 1, 128>}]} {
    %c0 = arith.constant 0 : index
    %c0_0 = arith.constant 0 : index
    %0 = vector.load %arg1[%c0, %c0_0] : memref<128x16xf32, #tpu.memory_space<vmem>>, vector<128x16xf32>
    %1 = arith.truncf %0 : vector<128x16xf32> to vector<128x16xbf16>
    %c0_1 = arith.constant 0 : index
    %c0_2 = arith.constant 0 : index
    %2 = vector.load %arg2[%c0_1, %c0_2] : memref<16x128xbf16, #tpu.memory_space<vmem>>, vector<16x128xbf16>
    %cst = arith.constant dense<0.000000e+00> : vector<128x128xf32>
    %3 = tpu.matmul %1, %2, %cst {dimension_numbers = #tpu.dot_dimension_numbers<[1], [0], [0], [1], [0, 0, 1, 1], [], []>} : vector<128x16xbf16>, vector<16x128xbf16>, vector<128x128xf32> -> vector<128x128xf32>
    %c0_3 = arith.constant 0 : index
    %c0_4 = arith.constant 0 : index
    %4 = vector.load %arg3[%c0_3, %c0_4] : memref<1x128xf32, #tpu.memory_space<vmem>>, vector<1x128xf32>
    %5 = vector.broadcast %4 : vector<1x128xf32> to vector<128x128xf32>
    %6 = arith.addf %3, %5 : vector<128x128xf32>
    %7 = math.tanh %6 : vector<128x128xf32>
    %8 = arith.truncf %7 : vector<128x128xf32> to vector<128x128xbf16>
    %c0_5 = arith.constant 0 : index
    %c0_6 = arith.constant 0 : index
    %9 = vector.load %arg4[%c0_5, %c0_6] : memref<128x128xbf16, #tpu.memory_space<vmem>>, vector<128x128xbf16>
    %cst_7 = arith.constant dense<0.000000e+00> : vector<128x128xf32>
    %10 = tpu.matmul %8, %9, %cst_7 {dimension_numbers = #tpu.dot_dimension_numbers<[1], [0], [0], [1], [0, 0, 1, 1], [], []>} : vector<128x128xbf16>, vector<128x128xbf16>, vector<128x128xf32> -> vector<128x128xf32>
    %c0_8 = arith.constant 0 : index
    %c0_9 = arith.constant 0 : index
    %11 = vector.load %arg5[%c0_8, %c0_9] : memref<1x128xf32, #tpu.memory_space<vmem>>, vector<1x128xf32>
    %12 = vector.broadcast %11 : vector<1x128xf32> to vector<128x128xf32>
    %13 = arith.addf %10, %12 : vector<128x128xf32>
    %14 = math.tanh %13 : vector<128x128xf32>
    %c0_10 = arith.constant 0 : index
    %c0_11 = arith.constant 0 : index
    %15 = vector.load %arg6[%c0_10, %c0_11] : memref<1x128xbf16, #tpu.memory_space<vmem>>, vector<1x128xbf16>
    %16 = arith.truncf %14 : vector<128x128xf32> to vector<128x128xbf16>
    %cst_12 = arith.constant dense<0.000000e+00> : vector<1x128xf32>
    %17 = tpu.matmul %15, %16, %cst_12 {dimension_numbers = #tpu.dot_dimension_numbers<[1], [1], [0], [0], [0, 0, 1, 0], [], []>} : vector<1x128xbf16>, vector<128x128xbf16>, vector<1x128xf32> -> vector<1x128xf32>
    %c0_13 = arith.constant 0 : index
    %c0_14 = arith.constant 0 : index
    %18 = vector.load %arg7[%c0_13, %c0_14] : memref<1x1xf32, #tpu.memory_space<vmem>>, vector<1x1xf32>
    %19 = vector.broadcast %18 : vector<1x1xf32> to vector<1x128xf32>
    %20 = arith.addf %17, %19 : vector<1x128xf32>
    %c0_15 = arith.constant 0 : index
    %c0_16 = arith.constant 0 : index
    %21 = vector.load %arg8[%c0_15, %c0_16] : memref<1x128xf32, #tpu.memory_space<vmem>>, vector<1x128xf32>
    tpu.vector_store %arg8[%c0_15, %c0_16], %20 {strides = array<i32>} : memref<1x128xf32, #tpu.memory_space<vmem>>, vector<1x128xf32>,
    return
  }
  func.func @transform_0(%arg0: i32) -> (i32, i32) {
    %c0_i32 = arith.constant 0 : i32
    %c0_i32_0 = arith.constant 0 : i32
    return %arg0, %c0_i32 : i32, i32
  }
  func.func @transform_1(%arg0: i32) -> (i32, i32) {
    %c0_i32 = arith.constant 0 : i32
    %c0_i32_0 = arith.constant 0 : i32
    %c0_i32_1 = arith.constant 0 : i32
    return %c0_i32, %c0_i32_0 : i32, i32
  }
  func.func @transform_2(%arg0: i32) -> (i32, i32) {
    %c0_i32 = arith.constant 0 : i32
    %c0_i32_0 = arith.constant 0 : i32
    %c0_i32_1 = arith.constant 0 : i32
    return %c0_i32, %c0_i32_0 : i32, i32
  }
  func.func @transform_3(%arg0: i32) -> (i32, i32) {
    %c0_i32 = arith.constant 0 : i32
    %c0_i32_0 = arith.constant 0 : i32
    %c0_i32_1 = arith.constant 0 : i32
    return %c0_i32, %c0_i32_0 : i32, i32
  }
  func.func @transform_4(%arg0: i32) -> (i32, i32) {
    %c0_i32 = arith.constant 0 : i32
    %c0_i32_0 = arith.constant 0 : i32
    %c0_i32_1 = arith.constant 0 : i32
    return %c0_i32, %c0_i32_0 : i32, i32
  }
  func.func @transform_5(%arg0: i32) -> (i32, i32) {
    %c0_i32 = arith.constant 0 : i32
    %c0_i32_0 = arith.constant 0 : i32
    %c0_i32_1 = arith.constant 0 : i32
    return %c0_i32, %c0_i32_0 : i32, i32
  }
  func.func @transform_6(%arg0: i32) -> (i32, i32) {
    %c0_i32 = arith.constant 0 : i32
    %c0_i32_0 = arith.constant 0 : i32
    %c0_i32_1 = arith.constant 0 : i32
    return %c0_i32, %c0_i32_0 : i32, i32
  }
  func.func @transform_7(%arg0: i32) -> (i32, i32) {
    %c0_i32 = arith.constant 0 : i32
    %c0_i32_0 = arith.constant 0 : i32
    return %arg0, %c0_i32 : i32, i32
  }
}

</mosaic_0001>

<llo_original>
// kernel: tpu_custom_call.1
$region0: #{tpu_custom_call.1}
  #allocation0 [shape = 'u32[]', space=smem, size = 0x4, offset = 0x4, fixed_abs, tag = 'smem constant byte address 0x4 - core index']
  #allocation1 [shape = 'u32[144,128]{1,0:T(1,128)}', space=vmem, size = 0x12000, scoped, tag = 'internal scratch']
  #allocation2 [shape = 'f32[1,1]{1,0:T(1,128)S(1)}', space=vmem, size = 0x200, scoped, tag = 'scoped memory for tpu_custom_call.1']
  %s0 = inlined_call_operand.vmem [shape: f32[128,16], index: 0, kind: input, shape index: {}]
  %s1 = inlined_call_operand.vmem [shape: bf16[16,128], index: 1, kind: input, shape index: {}]
  %s2 = inlined_call_operand.vmem [shape: f32[1,128], index: 2, kind: input, shape index: {}]
  %s3 = inlined_call_operand.vmem [shape: bf16[128,128], index: 3, kind: input, shape index: {}]
  %s4 = inlined_call_operand.vmem [shape: f32[1,128], index: 4, kind: input, shape index: {}]
  %s5 = inlined_call_operand.vmem [shape: bf16[1,128], index: 5, kind: input, shape index: {}]
  %s6 = inlined_call_operand.<no memory space> [shape: f32[1,1], index: 6, kind: input, shape index: {}]
  %s7 = inlined_call_operand.hbm [shape: f32[1,128], index: 7, kind: output, shape index: {}]
  %s8 = sld [smem:[#allocation0]]
  $region38: #{tpu_custom_call.1} parent=0
    _
  %s10 = ssub.s32 1, %s8
  %s11 = scalar_select 0, %s10, %s8
  %v12 = vstv %s6
  %13 = vst [vmem:[#allocation2] sm:$0x1] %v12
  $region1: #{tpu_custom_call.1} parent=0
    #allocation3 [shape = 'u8[512]{0}', space=vmem, size = 0x400, scoped, tag = 'output window, operand 0, single buffered']
    #allocation4 [shape = 's32[1]{0}', space=sflag, size = 0x4, scoped, tag = 'scoped memory for tpu_custom_call.1']
    %14 = vsyncpa [#allocation4], 0
    // Predicated region
    $region2: #{tpu_custom_call.1} parent=1 // pred_check
      _
    $region3: #{tpu_custom_call.1} parent=1 // pred_check_branch
      %16 = sbr.rel (0) target = $region5
    $region4: #{tpu_custom_call.1} parent=1 // pred_region
      _
    $region5: #{tpu_custom_call.1} parent=1 // pred_fallthru
      _
    // Predicated region
    $region6: #{tpu_custom_call.1} parent=1 // pred_check
      _
    $region7: #{tpu_custom_call.1} parent=1 // pred_check_branch
      %18 = sbr.rel (0) target = $region9
    $region8: #{tpu_custom_call.1} parent=1 // pred_region
      _
    $region9: #{tpu_custom_call.1} parent=1 // pred_fallthru
      _
    // Predicated region
    $region10: #{tpu_custom_call.1} parent=1 // pred_check
      _
    $region11: #{tpu_custom_call.1} parent=1 // pred_check_branch
      %20 = sbr.rel (0) target = $region13
    $region12: #{tpu_custom_call.1} parent=1 // pred_region
      _
    $region13: #{tpu_custom_call.1} parent=1 // pred_fallthru
      _
    // Predicated region
    $region14: #{tpu_custom_call.1} parent=1 // pred_check
      _
    $region15: #{tpu_custom_call.1} parent=1 // pred_check_branch
      %22 = sbr.rel (0) target = $region17
    $region16: #{tpu_custom_call.1} parent=1 // pred_region
      _
    $region17: #{tpu_custom_call.1} parent=1 // pred_fallthru
      _
    // Predicated region
    $region18: #{tpu_custom_call.1} parent=1 // pred_check
      _
    $region19: #{tpu_custom_call.1} parent=1 // pred_check_branch
      %24 = sbr.rel (0) target = $region21
    $region20: #{tpu_custom_call.1} parent=1 // pred_region
      _
    $region21: #{tpu_custom_call.1} parent=1 // pred_fallthru
      _
    // Predicated region
    $region22: #{tpu_custom_call.1} parent=1 // pred_check
      _
    $region23: #{tpu_custom_call.1} parent=1 // pred_check_branch
      %26 = sbr.rel (0) target = $region25
    $region24: #{tpu_custom_call.1} parent=1 // pred_region
      _
    $region25: #{tpu_custom_call.1} parent=1 // pred_fallthru
      _
    // Predicated region
    $region26: #{tpu_custom_call.1} parent=1 // pred_check
      _
    $region27: #{tpu_custom_call.1} parent=1 // pred_check_branch
      %28 = sbr.rel (0) target = $region29
    $region28: #{tpu_custom_call.1} parent=1 // pred_region
      _
    $region29: #{tpu_custom_call.1} parent=1 // pred_fallthru
      _
    %v30 = vld [vmem:[%s0] sm:$0xff]
    %v31 = vld [vmem:[%s0 + $0x8] sm:$0xff]
    %v32 = vld [vmem:[%s0 + $0x10] sm:$0xff]
    %v33 = vld [vmem:[%s0 + $0x18] sm:$0xff]
    %v34 = vld [vmem:[%s0 + $0x20] sm:$0xff]
    %v35 = vld [vmem:[%s0 + $0x28] sm:$0xff]
    %v36 = vld [vmem:[%s0 + $0x30] sm:$0xff]
    %v37 = vld [vmem:[%s0 + $0x38] sm:$0xff]
    %v38 = vld [vmem:[%s0 + $0x40] sm:$0xff]
    %v39 = vld [vmem:[%s0 + $0x48] sm:$0xff]
    %v40 = vld [vmem:[%s0 + $0x50] sm:$0xff]
    %v41 = vld [vmem:[%s0 + $0x58] sm:$0xff]
    %v42 = vld [vmem:[%s0 + $0x60] sm:$0xff]
    %v43 = vld [vmem:[%s0 + $0x68] sm:$0xff]
    %v44 = vld [vmem:[%s0 + $0x70] sm:$0xff]
    %v45 = vld [vmem:[%s0 + $0x78] sm:$0xff]
    %v46 = vpack.c.bf16 %v31, %v30
    %v47 = vpack.c.bf16 %v33, %v32
    %v48 = vpack.c.bf16 %v35, %v34
    %v49 = vpack.c.bf16 %v37, %v36
    %v50 = vpack.c.bf16 %v39, %v38
    %v51 = vpack.c.bf16 %v41, %v40
    %v52 = vpack.c.bf16 %v43, %v42
    %v53 = vpack.c.bf16 %v45, %v44
    %v54 = vld [vmem:[%s1] sm:$0xf]
    %v55 = vld [vmem:[%s1 + $0x4] sm:$0xf]
    %v56 = vld [vmem:[%s2] sm:$0x1]
    %v58 = vlaneseq
    %v59 = vshrl.u32 %v58, 7
    %v60 = vsub.s32 0, %v59
    %v61 = vrot.slane %v56, %v60
    %v65 = vunpack.c.l.b16 %v54
    %v66 = vunpack.c.l.b16 %v55
    %v67 = vpack.c.b16 %v66, %v65
    %vm69 = vcmask 130048
    %v71 = vsel %vm69, %v46, 0
    %v74 = vsel %vm69, %v47, 0
    %v77 = vsel %vm69, %v48, 0
    %v80 = vsel %vm69, %v49, 0
    %v83 = vsel %vm69, %v50, 0
    %v86 = vsel %vm69, %v51, 0
    %v89 = vsel %vm69, %v52, 0
    %v92 = vsel %vm69, %v53, 0
    %94 = vmatprep.subr.bf16.mxu0 0
    %95 = vmatpush1.bf16.msra.mxu0 %v67
    %96 = vmatprep.subr.bf16.mxu0 0
    %97 = vmatpush1.bf16.msra.mxu0 0
    %98 = vmatprep.subr.bf16.mxu0 0
    %99 = vmatpush1.bf16.msra.mxu0 0
    %100 = vmatprep.subr.bf16.mxu0 0
    %101 = vmatpush1.bf16.msra.mxu0 0
    %102 = vmatprep.subr.bf16.mxu0 0
    %103 = vmatpush1.bf16.msra.mxu0 0
    %104 = vmatprep.subr.bf16.mxu0 0
    %105 = vmatpush1.bf16.msra.mxu0 0
    %106 = vmatprep.subr.bf16.mxu0 0
    %107 = vmatpush1.bf16.msra.mxu0 0
    %108 = vmatprep.subr.bf16.mxu0 0
    %109 = vmatpush1.bf16.msra.mxu0 0
    %110 = vmatprep.subr.bf16.mxu0 0
    %111 = vmatpush1.bf16.msra.mxu0 0
    %112 = vmatprep.subr.bf16.mxu0 0
    %113 = vmatpush1.bf16.msra.mxu0 0
    %114 = vmatprep.subr.bf16.mxu0 0
    %115 = vmatpush1.bf16.msra.mxu0 0
    %116 = vmatprep.subr.bf16.mxu0 0
    %117 = vmatpush1.bf16.msra.mxu0 0
    %118 = vmatprep.subr.bf16.mxu0 0
    %119 = vmatpush1.bf16.msra.mxu0 0
    %120 = vmatprep.subr.bf16.mxu0 0
    %121 = vmatpush1.bf16.msra.mxu0 0
    %122 = vmatprep.subr.bf16.mxu0 0
    %123 = vmatpush1.bf16.msra.mxu0 0
    %124 = vmatprep.subr.bf16.mxu0 0
    %125 = vmatpush1.bf16.msra.mxu0 0
    %126 = vmatprep.mubr.bf16.mxu0 0
    %127 = vmatmul.mubr.bf16.gmra.mrb[0].mxu0 %v71
    %v128 = vpop.f32.mrb[0].mxu0
    %v129 = vadd.f32 %v61, %v128
    %v130 = vpop.f32.mrb[0].mxu0
    %v131 = vpop.f32.mrb[0].mxu0
    %v132 = vadd.f32 %v61, %v131
    %v133 = vpop.f32.mrb[0].mxu0
    %134 = vmatprep.mubr.bf16.mxu0 0
    %135 = vmatmul.mubr.bf16.gmra.mrb[0].mxu0 %v74
    %v136 = vpop.f32.mrb[0].mxu0
    %v137 = vadd.f32 %v61, %v136
    %v138 = vpop.f32.mrb[0].mxu0
    %v139 = vpop.f32.mrb[0].mxu0
    %v140 = vadd.f32 %v61, %v139
    %v141 = vpop.f32.mrb[0].mxu0
    %142 = vmatprep.mubr.bf16.mxu0 0
    %143 = vmatmul.mubr.bf16.gmra.mrb[0].mxu0 %v77
    %v144 = vpop.f32.mrb[0].mxu0
    %v145 = vadd.f32 %v61, %v144
    %v146 = vpop.f32.mrb[0].mxu0
    %v147 = vpop.f32.mrb[0].mxu0
    %v148 = vadd.f32 %v61, %v147
    %v149 = vpop.f32.mrb[0].mxu0
    %150 = vmatprep.mubr.bf16.mxu0 0
    %151 = vmatmul.mubr.bf16.gmra.mrb[0].mxu0 %v80
    %v152 = vpop.f32.mrb[0].mxu0
    %v153 = vadd.f32 %v61, %v152
    %v154 = vpop.f32.mrb[0].mxu0
    %v155 = vpop.f32.mrb[0].mxu0
    %v156 = vadd.f32 %v61, %v155
    %v157 = vpop.f32.mrb[0].mxu0
    %158 = vmatprep.mubr.bf16.mxu0 0
    %159 = vmatmul.mubr.bf16.gmra.mrb[0].mxu0 %v83
    %v160 = vpop.f32.mrb[0].mxu0
    %v161 = vadd.f32 %v61, %v160
    %v162 = vpop.f32.mrb[0].mxu0
    %v163 = vpop.f32.mrb[0].mxu0
    %v164 = vadd.f32 %v61, %v163
    %v165 = vpop.f32.mrb[0].mxu0
    %166 = vmatprep.mubr.bf16.mxu0 0
    %167 = vmatmul.mubr.bf16.gmra.mrb[0].mxu0 %v86
    %v168 = vpop.f32.mrb[0].mxu0
    %v169 = vadd.f32 %v61, %v168
    %v170 = vpop.f32.mrb[0].mxu0
    %v171 = vpop.f32.mrb[0].mxu0
    %v172 = vadd.f32 %v61, %v171
    %v173 = vpop.f32.mrb[0].mxu0
    %174 = vmatprep.mubr.bf16.mxu0 0
    %175 = vmatmul.mubr.bf16.gmra.mrb[0].mxu0 %v89
    %v176 = vpop.f32.mrb[0].mxu0
    %v177 = vadd.f32 %v61, %v176
    %v178 = vpop.f32.mrb[0].mxu0
    %v179 = vpop.f32.mrb[0].mxu0
    %v180 = vadd.f32 %v61, %v179
    %v181 = vpop.f32.mrb[0].mxu0
    %182 = vmatprep.mubr.bf16.mxu0 0
    %183 = vmatmul.mubr.bf16.gmra.mrb[0].mxu0 %v92
    %v184 = vpop.f32.mrb[0].mxu0
    %v185 = vadd.f32 %v61, %v184
    %v186 = vpop.f32.mrb[0].mxu0
    %v187 = vpop.f32.mrb[0].mxu0
    %v188 = vadd.f32 %v61, %v187
    %v189 = vpop.f32.mrb[0].mxu0
    %190 = vdwg.mxu0
    %v191 = vtanh.pop %v129
    %v192 = vtanh.pop %v132
    %v193 = vtanh.pop %v137
    %v194 = vtanh.pop %v140
    %v195 = vtanh.pop %v145
    %v196 = vtanh.pop %v148
    %v197 = vtanh.pop %v153
    %v198 = vtanh.pop %v156
    %v199 = vtanh.pop %v161
    %v200 = vtanh.pop %v164
    %v201 = vtanh.pop %v169
    %v202 = vtanh.pop %v172
    %v203 = vtanh.pop %v177
    %v204 = vtanh.pop %v180
    %v205 = vtanh.pop %v185
    %v206 = vtanh.pop %v188
    %v207 = vpack.c.bf16 %v192, %v191
    %v208 = vpack.c.bf16 %v194, %v193
    %v209 = vpack.c.bf16 %v196, %v195
    %v210 = vpack.c.bf16 %v198, %v197
    %v211 = vpack.c.bf16 %v200, %v199
    %v212 = vpack.c.bf16 %v202, %v201
    %v213 = vpack.c.bf16 %v204, %v203
    %v214 = vpack.c.bf16 %v206, %v205
    %v215 = vld [vmem:[%s3] sm:$0xf]
    %v216 = vld [vmem:[%s3 + $0x4] sm:$0xf]
    %v217 = vld [vmem:[%s3 + $0x8] sm:$0xf]
    %v218 = vld [vmem:[%s3 + $0xc] sm:$0xf]
    %v219 = vld [vmem:[%s3 + $0x10] sm:$0xf]
    %v220 = vld [vmem:[%s3 + $0x14] sm:$0xf]
    %v221 = vld [vmem:[%s3 + $0x18] sm:$0xf]
    %v222 = vld [vmem:[%s3 + $0x1c] sm:$0xf]
    %v223 = vld [vmem:[%s3 + $0x20] sm:$0xf]
    %v224 = vld [vmem:[%s3 + $0x24] sm:$0xf]
    %v225 = vld [vmem:[%s3 + $0x28] sm:$0xf]
    %v226 = vld [vmem:[%s3 + $0x2c] sm:$0xf]
    %v227 = vld [vmem:[%s3 + $0x30] sm:$0xf]
    %v228 = vld [vmem:[%s3 + $0x34] sm:$0xf]
    %v229 = vld [vmem:[%s3 + $0x38] sm:$0xf]
    %v230 = vld [vmem:[%s3 + $0x3c] sm:$0xf]
    %v231 = vld [vmem:[%s4] sm:$0x1]
    %v233 = vlaneseq
    %v234 = vshrl.u32 %v233, 7
    %v235 = vsub.s32 0, %v234
    %v236 = vrot.slane %v231, %v235
    %v254 = vunpack.c.l.b16 %v215
    %v255 = vunpack.c.l.b16 %v216
    %v256 = vunpack.c.l.b16 %v217
    %v257 = vunpack.c.l.b16 %v218
    %v258 = vunpack.c.l.b16 %v219
    %v259 = vunpack.c.l.b16 %v220
    %v260 = vunpack.c.l.b16 %v221
    %v261 = vunpack.c.l.b16 %v222
    %v262 = vunpack.c.l.b16 %v223
    %v263 = vunpack.c.l.b16 %v224
    %v264 = vunpack.c.l.b16 %v225
    %v265 = vunpack.c.l.b16 %v226
    %v266 = vunpack.c.l.b16 %v227
    %v267 = vunpack.c.l.b16 %v228
    %v268 = vunpack.c.l.b16 %v229
    %v269 = vunpack.c.l.b16 %v230
    %v270 = vpack.c.b16 %v255, %v254
    %v271 = vpack.c.b16 %v257, %v256
    %v272 = vpack.c.b16 %v259, %v258
    %v273 = vpack.c.b16 %v261, %v260
    %v274 = vpack.c.b16 %v263, %v262
    %v275 = vpack.c.b16 %v265, %v264
    %v276 = vpack.c.b16 %v267, %v266
    %v277 = vpack.c.b16 %v269, %v268
    %286 = vmatprep.subr.bf16.mxu0 0
    %287 = vmatpush1.bf16.msra.mxu0 %v270
    %288 = vmatprep.subr.bf16.mxu0 0
    %289 = vmatpush1.bf16.msra.mxu0 %v271
    %290 = vmatprep.subr.bf16.mxu0 0
    %291 = vmatpush1.bf16.msra.mxu0 %v272
    %292 = vmatprep.subr.bf16.mxu0 0
    %293 = vmatpush1.bf16.msra.mxu0 %v273
    %294 = vmatprep.subr.bf16.mxu0 0
    %295 = vmatpush1.bf16.msra.mxu0 %v274
    %296 = vmatprep.subr.bf16.mxu0 0
    %297 = vmatpush1.bf16.msra.mxu0 %v275
    %298 = vmatprep.subr.bf16.mxu0 0
    %299 = vmatpush1.bf16.msra.mxu0 %v276
    %300 = vmatprep.subr.bf16.mxu0 0
    %301 = vmatpush1.bf16.msra.mxu0 %v277
    %302 = vmatprep.subr.bf16.mxu0 0
    %303 = vmatpush1.bf16.msra.mxu0 0
    %304 = vmatprep.subr.bf16.mxu0 0
    %305 = vmatpush1.bf16.msra.mxu0 0
    %306 = vmatprep.subr.bf16.mxu0 0
    %307 = vmatpush1.bf16.msra.mxu0 0
    %308 = vmatprep.subr.bf16.mxu0 0
    %309 = vmatpush1.bf16.msra.mxu0 0
    %310 = vmatprep.subr.bf16.mxu0 0
    %311 = vmatpush1.bf16.msra.mxu0 0
    %312 = vmatprep.subr.bf16.mxu0 0
    %313 = vmatpush1.bf16.msra.mxu0 0
    %314 = vmatprep.subr.bf16.mxu0 0
    %315 = vmatpush1.bf16.msra.mxu0 0
    %316 = vmatprep.subr.bf16.mxu0 0
    %317 = vmatpush1.bf16.msra.mxu0 0
    %318 = vmatprep.mubr.bf16.mxu0 0
    %319 = vmatmul.mubr.bf16.gmra.mrb[0].mxu0 %v207
    %v320 = vpop.f32.mrb[0].mxu0
    %v321 = vadd.f32 %v236, %v320
    %v322 = vpop.f32.mrb[0].mxu0
    %v323 = vpop.f32.mrb[0].mxu0
    %v324 = vadd.f32 %v236, %v323
    %v325 = vpop.f32.mrb[0].mxu0
    %326 = vmatprep.mubr.bf16.mxu0 0
    %327 = vmatmul.mubr.bf16.gmra.mrb[0].mxu0 %v208
    %v328 = vpop.f32.mrb[0].mxu0
    %v329 = vadd.f32 %v236, %v328
    %v330 = vpop.f32.mrb[0].mxu0
    %v331 = vpop.f32.mrb[0].mxu0
    %v332 = vadd.f32 %v236, %v331
    %v333 = vpop.f32.mrb[0].mxu0
    %334 = vmatprep.mubr.bf16.mxu0 0
    %335 = vmatmul.mubr.bf16.gmra.mrb[0].mxu0 %v209
    %v336 = vpop.f32.mrb[0].mxu0
    %v337 = vadd.f32 %v236, %v336
    %v338 = vpop.f32.mrb[0].mxu0
    %v339 = vpop.f32.mrb[0].mxu0
    %v340 = vadd.f32 %v236, %v339
    %v341 = vpop.f32.mrb[0].mxu0
    %342 = vmatprep.mubr.bf16.mxu0 0
    %343 = vmatmul.mubr.bf16.gmra.mrb[0].mxu0 %v210
    %v344 = vpop.f32.mrb[0].mxu0
    %v345 = vadd.f32 %v236, %v344
    %v346 = vpop.f32.mrb[0].mxu0
    %v347 = vpop.f32.mrb[0].mxu0
    %v348 = vadd.f32 %v236, %v347
    %v349 = vpop.f32.mrb[0].mxu0
    %350 = vmatprep.mubr.bf16.mxu0 0
    %351 = vmatmul.mubr.bf16.gmra.mrb[0].mxu0 %v211
    %v352 = vpop.f32.mrb[0].mxu0
    %v353 = vadd.f32 %v236, %v352
    %v354 = vpop.f32.mrb[0].mxu0
    %v355 = vpop.f32.mrb[0].mxu0
    %v356 = vadd.f32 %v236, %v355
    %v357 = vpop.f32.mrb[0].mxu0
    %358 = vmatprep.mubr.bf16.mxu0 0
    %359 = vmatmul.mubr.bf16.gmra.mrb[0].mxu0 %v212
    %v360 = vpop.f32.mrb[0].mxu0
    %v361 = vadd.f32 %v236, %v360
    %v362 = vpop.f32.mrb[0].mxu0
    %v363 = vpop.f32.mrb[0].mxu0
    %v364 = vadd.f32 %v236, %v363
    %v365 = vpop.f32.mrb[0].mxu0
    %366 = vmatprep.mubr.bf16.mxu0 0
    %367 = vmatmul.mubr.bf16.gmra.mrb[0].mxu0 %v213
    %v368 = vpop.f32.mrb[0].mxu0
    %v369 = vadd.f32 %v236, %v368
    %v370 = vpop.f32.mrb[0].mxu0
    %v371 = vpop.f32.mrb[0].mxu0
    %v372 = vadd.f32 %v236, %v371
    %v373 = vpop.f32.mrb[0].mxu0
    %374 = vmatprep.mubr.bf16.mxu0 0
    %375 = vmatmul.mubr.bf16.gmra.mrb[0].mxu0 %v214
    %v376 = vpop.f32.mrb[0].mxu0
    %v377 = vadd.f32 %v236, %v376
    %v378 = vpop.f32.mrb[0].mxu0
    %v379 = vpop.f32.mrb[0].mxu0
    %v380 = vadd.f32 %v236, %v379
    %v381 = vpop.f32.mrb[0].mxu0
    %382 = vdwg.mxu0
    %v383 = vtanh.pop %v321
    %v384 = vtanh.pop %v324
    %v385 = vtanh.pop %v329
    %v386 = vtanh.pop %v332
    %v387 = vtanh.pop %v337
    %v388 = vtanh.pop %v340
    %v389 = vtanh.pop %v345
    %v390 = vtanh.pop %v348
    %v391 = vtanh.pop %v353
    %v392 = vtanh.pop %v356
    %v393 = vtanh.pop %v361
    %v394 = vtanh.pop %v364
    %v395 = vtanh.pop %v369
    %v396 = vtanh.pop %v372
    %v397 = vtanh.pop %v377
    %v398 = vtanh.pop %v380
    %v399 = vld [vmem:[%s5] sm:$0x1]
    %v400 = vpack.c.bf16 %v384, %v383
    %v401 = vpack.c.bf16 %v386, %v385
    %v402 = vpack.c.bf16 %v388, %v387
    %v403 = vpack.c.bf16 %v390, %v389
    %v404 = vpack.c.bf16 %v392, %v391
    %v405 = vpack.c.bf16 %v394, %v393
    %v406 = vpack.c.bf16 %v396, %v395
    %v407 = vpack.c.bf16 %v398, %v397
    %v408 = vld [vmem:[#allocation2] sm:$0x1]
    %410 = vset.pattern.permute.xlu0 0
    %411 = vperm.xlu0 %410, %v408
    %v412 = vpop.permute.xlu0 %411
    %v414 = vlaneseq
    %v415 = vshrl.u32 %v414, 7
    %v416 = vsub.s32 0, %v415
    %v417 = vrot.slane %v412, %v416
    %418 = vmatprep.subr.bf16.mxu0 0
    %419 = vmatpush1.bf16.xpose.msra.mxu0 %v400
    %420 = vmatprep.subr.bf16.mxu0 0
    %421 = vmatpush1.bf16.xpose.msra.mxu0 %v401
    %422 = vmatprep.subr.bf16.mxu0 0
    %423 = vmatpush1.bf16.xpose.msra.mxu0 %v402
    %424 = vmatprep.subr.bf16.mxu0 0
    %425 = vmatpush1.bf16.xpose.msra.mxu0 %v403
    %426 = vmatprep.subr.bf16.mxu0 0
    %427 = vmatpush1.bf16.xpose.msra.mxu0 %v404
    %428 = vmatprep.subr.bf16.mxu0 0
    %429 = vmatpush1.bf16.xpose.msra.mxu0 %v405
    %430 = vmatprep.subr.bf16.mxu0 0
    %431 = vmatpush1.bf16.xpose.msra.mxu0 %v406
    %432 = vmatprep.subr.bf16.mxu0 0
    %433 = vmatpush1.bf16.xpose.msra.mxu0 %v407
    %434 = vmatprep.subr.bf16.mxu0 0
    %435 = vmatpush1.bf16.xpose.msra.mxu0 0
    %436 = vmatprep.subr.bf16.mxu0 0
    %437 = vmatpush1.bf16.xpose.msra.mxu0 0
    %438 = vmatprep.subr.bf16.mxu0 0
    %439 = vmatpush1.bf16.xpose.msra.mxu0 0
    %440 = vmatprep.subr.bf16.mxu0 0
    %441 = vmatpush1.bf16.xpose.msra.mxu0 0
    %442 = vmatprep.subr.bf16.mxu0 0
    %443 = vmatpush1.bf16.xpose.msra.mxu0 0
    %444 = vmatprep.subr.bf16.mxu0 0
    %445 = vmatpush1.bf16.xpose.msra.mxu0 0
    %446 = vmatprep.subr.bf16.mxu0 0
    %447 = vmatpush1.bf16.xpose.msra.mxu0 0
    %448 = vmatprep.subr.bf16.mxu0 0
    %449 = vmatpush1.bf16.xpose.msra.mxu0 0
    %450 = vmatprep.mubr.bf16.mxu0 0
    %451 = vmatmul.mubr.bf16.gmra.mrb[0].mxu0 %v399
    %v452 = vpop.f32.mrb[0].mxu0
    %v453 = vadd.f32 %v417, %v452
    %v454 = vpop.f32.mrb[0].mxu0
    %v455 = vpop.f32.mrb[0].mxu0
    %v456 = vpop.f32.mrb[0].mxu0
    %457 = vdwg.mxu0
    %458 = vst [vmem:[#allocation3] sm:$0x1] %v453
    // Predicated region
    $region30: #{tpu_custom_call.1} parent=1 // pred_check
      _
    $region31: #{tpu_custom_call.1} parent=1 // pred_check_branch
      %460 = sbr.rel (0) target = $region33
    $region32: #{tpu_custom_call.1} parent=1 // pred_region
      %s462 = ssub.s32 16, 16
      %463 = vsyncadd [#allocation4], %s462
      %s465 = sshll.u32 [#allocation3], 4
      %s466 = int_to_ptr.vmem [resolvable:$true] %s465
      %468 = dma.vmem_to_hbm [thread:$0]  %s466, 16, %s7, [#allocation4]
    $region33: #{tpu_custom_call.1} parent=1 // pred_fallthru
      _
    // Predicated region
    $region34: #{tpu_custom_call.1} parent=1 // pred_check
      _
    $region35: #{tpu_custom_call.1} parent=1 // pred_check_branch
      %470 = sbr.rel (0) target = $region37
    $region36: #{tpu_custom_call.1} parent=1 // pred_region
      %471 = dma.done [#allocation4], 16
    $region37: #{tpu_custom_call.1} parent=1 // pred_fallthru
      _
    %472 = vsyncpa [#allocation4], 1

</llo_original>
